<compile_context>
chip_gen: v6e
topology: v6e:2x2x1
jax: 0.10.0
libtpu: 0.0.40
codegen_flags: <defaults>
</compile_context>

<pallas_src>
import functools

import jax
import jax.numpy as jnp
from jax.experimental import pallas as pl
from jax.experimental.pallas import tpu as pltpu


def _value_head_kernel(x_ref, w_ref, b_ref, o_ref):
    # x_ref: (TB, H) VMEM; w_ref: (1, H) VMEM; b_ref: (1,) f32 SMEM; o_ref: (1, TB) VMEM.
    x = x_ref[...]
    w = w_ref[...]
    if x.dtype == jnp.float32:
        # Native f32 VPU multiply + lane reduce (no upcast, no MXU passes).
        acc = jnp.sum(x * w, axis=-1)[None, :]                  # (1, TB) f32
    else:
        # bf16 etc.: contract on the MXU with an f32 accumulator. w @ x^T gives
        # a lane-dense (1, TB) result directly and avoids any full-tile upcast.
        acc = jax.lax.dot_general(
            w, x, (((1,), (1,)), ((), ())),
            preferred_element_type=jnp.float32)                 # (1, TB) f32
    o_ref[...] = (acc + b_ref[0]).astype(o_ref.dtype)


def _tpu_vmem_capacity_bytes():
    try:
        return int(pltpu.get_tpu_info().vmem_capacity_bytes)
    except Exception:
        return 64 * 1024 * 1024          # conservative (v7x-like) if query unavailable


def _num_tensorcores_per_chip():
    try:
        kind = jax.devices()[0].device_kind.lower()
    except Exception:
        return 1
    return 2 if "v7" in kind else 1      # v5e / v6e: 1 TC per chip; v7x: 2


def _vmem_plan():
    """(x-tile byte target, scoped VMEM limit) chosen per TPU generation."""
    if _tpu_vmem_capacity_bytes() >= 100 * 1024 * 1024:     # v5e / v6e: 128 MiB physical
        return 16 * 1024 * 1024, 64 * 1024 * 1024
    return 10 * 1024 * 1024, 40 * 1024 * 1024               # v7x: 64 MiB per TC


def _choose_block_b(B, H, x_itemsize, w_itemsize):
    """Row-tile size: multiple of 128 (lane-dense output block), VMEM-budgeted."""
    x_tile_target, vmem_limit = _vmem_plan()
    h_pad = ((H + 127) // 128) * 128

    # Resident weight row: 2 pipeline buffers x 8-sublane padding.
    w_bytes = 2 * 8 * h_pad * w_itemsize
    usable = int(0.8 * vmem_limit) - w_bytes

    # Per-row VMEM: 2 x-buffers, the f32 product temporary of the VPU path
    # (f32 inputs only; the MXU path keeps just a (1, tb) accumulator), and the
    # 8-sublane-padded lane-dense output (2 buffers).
    tmp_per_row = h_pad * 4 if x_itemsize == 4 else 0
    per_row = 2 * h_pad * x_itemsize + tmp_per_row + 2 * 8 * x_itemsize
    cap_rows = max(128, usable // per_row)

    tb = min(max(128, x_tile_target // (h_pad * x_itemsize)), int(cap_rows))
    tb = max(128, (tb // 128) * 128)

    if B <= tb:
        # Whole batch fits in one block. Split in two only on 2-TC chips (v7x)
        # so the "parallel" grid axis has work for both cores.
        if _num_tensorcores_per_chip() >= 2 and B >= 256 and B % 256 == 0:
            return B // 2
        return B
    return tb


@functools.partial(jax.jit, static_argnames=("block_b",))
def value_head_forward(x, w, b, *, block_b=None):
    """x: [..., H]; w: [1, H] (PyTorch Linear layout); b: [1]. Returns x.shape[:-1]."""
    H = x.shape[-1]
    assert w.shape == (1, H), w.shape
    assert b.shape == (1,), b.shape

    lead = x.shape[:-1]
    x2 = x.reshape(-1, H)
    B = x2.shape[0]

    w = w.astype(x2.dtype)               # single-dtype contraction in the kernel
    b32 = b.astype(jnp.float32)          # SMEM scalar; added to the f32 accumulator

    if block_b is None:
        tb = _choose_block_b(B, H, x2.dtype.itemsize, w.dtype.itemsize)
    else:
        tb = int(block_b)
    if tb >= B:
        tb = B
    else:
        tb = max(128, (tb // 128) * 128)   # lane-dense out block: multiple of 128
        if tb >= B:
            tb = B
    grid = (pl.cdiv(B, tb),)

    _, vmem_limit = _vmem_plan()

    out = pl.pallas_call(
        _value_head_kernel,
        out_shape=jax.ShapeDtypeStruct((1, B), x2.dtype),
        grid_spec=pltpu.PrefetchScalarGridSpec(
            num_scalar_prefetch=0,
            grid=grid,
            in_specs=[
                pl.BlockSpec((tb, H), lambda i: (i, 0)),            # x row tile (streamed)
                pl.BlockSpec((1, H), lambda i: (0, 0)),             # weight row (resident)
                pl.BlockSpec(memory_space=pltpu.MemorySpace.SMEM),  # f32 bias scalar
            ],
            out_specs=pl.BlockSpec((1, tb), lambda i: (0, i)),      # lane-dense output
        ),
        compiler_params=pltpu.CompilerParams(
            # TODO(synk): if plain "parallel" does not shard row blocks across
            # the 2 TensorCores on v7x, add a leading size-2 CORE_PARALLEL axis.
            dimension_semantics=("parallel",),
            vmem_limit_bytes=vmem_limit,
        ),
    )(x2, w, b32)

    # torch.squeeze(out, -1)
    return out.reshape(lead)


def init_value_head_params(key, input_size, dtype=jnp.float32):
    """torch.nn.Linear default init (uniform +/- 1/sqrt(in)); PyTorch layout [1, H]."""
    kw, kb = jax.random.split(key)
    bound = 1.0 / (input_size ** 0.5)
    w = jax.random.uniform(kw, (1, input_size), dtype, minval=-bound, maxval=bound)
    b = jax.random.uniform(kb, (1,), dtype, minval=-bound, maxval=bound)
    return w, b


def _ref_value_head(x, w, b):
    # Pure-VPU reference (avoids XLA's reduced-precision f32 matmul passes).
    return jnp.sum(x.astype(jnp.float32) * w.astype(jnp.float32)[0], axis=-1) \
        + b.astype(jnp.float32)[0]


if __name__ == "__main__":
    key = jax.random.PRNGKey(0)
    k_x, k_p, k_x2, k_p2, k_x3, k_x4, k_p4 = jax.random.split(key, 7)

    # 1) Small case matching the module spec (batch=2, hidden=32), f32 VPU path.
    batch, hidden = 2, 32
    x = jax.random.normal(k_x, (batch, hidden), jnp.float32)
    w, b = init_value_head_params(k_p, hidden)
    out = value_head_forward(x, w, b)
    jax.block_until_ready(out)
    ref = _ref_value_head(x, w, b)
    assert out.shape == (batch,), out.shape
    assert jnp.allclose(out, ref, atol=1e-4, rtol=1e-4)

    # 2) Multi-block grid + ragged last block (200 = 128 + 72), f32 path.
    B2, H2 = 200, 256
    x2 = jax.random.normal(k_x2, (B2, H2), jnp.float32)
    w2, b2 = init_value_head_params(k_p2, H2)
    out2 = value_head_forward(x2, w2, b2, block_b=128)   # grid=(2,), ragged last block
    jax.block_until_ready(out2)
    ref2 = _ref_value_head(x2, w2, b2)
    assert out2.shape == (B2,), out2.shape
    assert jnp.allclose(out2, ref2, atol=1e-4, rtol=1e-4)

    # 3) Leading-dims input (squeeze(-1) semantics on [T, B, H]).
    x3 = jax.random.normal(k_x3, (3, 5, 64), jnp.float32)
    w3, b3 = init_value_head_params(k_p, 64)
    out3 = value_head_forward(x3, w3, b3)
    jax.block_until_ready(out3)
    ref3 = _ref_value_head(x3, w3, b3)
    assert out3.shape == (3, 5), out3.shape
    assert jnp.allclose(out3, ref3, atol=1e-4, rtol=1e-4)

    # 4) bf16 inputs exercise the MXU (no-upcast) contraction path.
    B4, H4 = 256, 128
    x4 = jax.random.normal(k_x4, (B4, H4), jnp.float32).astype(jnp.bfloat16)
    w4, b4 = init_value_head_params(k_p4, H4, dtype=jnp.bfloat16)
    out4 = value_head_forward(x4, w4, b4, block_b=128)   # grid=(2,)
    jax.block_until_ready(out4)
    ref4 = _ref_value_head(x4, w4, b4)
    assert out4.shape == (B4,), out4.shape
    assert jnp.allclose(out4.astype(jnp.float32), ref4, atol=1e-2, rtol=1e-2)

    # TODO(synk): return_normalizer is an optional user-supplied callable; it is
    # None in this setup, so no kernel is emitted for it (same for the `fn`
    # weight-init hook, which only affects parameter initialization).
    print("KERNEL_OK")
</pallas_src>

<mosaic_0001>
module attributes {stable_mosaic.version = 11 : i64} {
  func.func @_value_head_kernel(%arg0: i32, %arg1: memref<2x32xf32, #tpu.memory_space<vmem>>, %arg2: memref<1x32xf32, #tpu.memory_space<vmem>>, %arg3: memref<1xf32, #tpu.memory_space<smem>>, %arg4: memref<1x2xf32, #tpu.memory_space<vmem>>) attributes {dimension_semantics = [#tpu.dimension_semantics<parallel>], iteration_bounds = array<i64: 1>, scalar_prefetch = 0 : i64, scratch_operands = 0 : i64, tpu.core_type = #tpu.core_type<tc>, window_params = [{transform_indices = @transform_0, window_bounds = array<i64: 2, 32>}, {pipeline_mode = #tpu.pipeline_mode<synchronous>, transform_indices = @transform_1, window_bounds = array<i64: 1, 32>}, {transform_indices = @transform_2, window_bounds = array<i64: 1>}, {transform_indices = @transform_3, window_bounds = array<i64: 1, 2>}]} {
    %c0 = arith.constant 0 : index
    %c0_0 = arith.constant 0 : index
    %0 = vector.load %arg1[%c0, %c0_0] : memref<2x32xf32, #tpu.memory_space<vmem>>, vector<2x32xf32>
    %c0_1 = arith.constant 0 : index
    %c0_2 = arith.constant 0 : index
    %1 = vector.load %arg2[%c0_1, %c0_2] : memref<1x32xf32, #tpu.memory_space<vmem>>, vector<1x32xf32>
    %2 = vector.broadcast %1 : vector<1x32xf32> to vector<2x32xf32>
    %3 = arith.mulf %0, %2 : vector<2x32xf32>
    %cst = arith.constant dense<0.000000e+00> : vector<2xf32>
    %4 = vector.multi_reduction <add>, %3, %cst [1] : vector<2x32xf32> to vector<2xf32>
    %5 = vector.shape_cast %4 : vector<2xf32> to vector<1x2xf32>
    %c0_3 = arith.constant 0 : index
    %6 = memref.load %arg3[%c0_3] : memref<1xf32, #tpu.memory_space<smem>>
    %7 = vector.broadcast %6 : f32 to vector<1x2xf32>
    %8 = arith.addf %5, %7 : vector<1x2xf32>
    %c0_4 = arith.constant 0 : index
    %c0_5 = arith.constant 0 : index
    %9 = vector.load %arg4[%c0_4, %c0_5] : memref<1x2xf32, #tpu.memory_space<vmem>>, vector<1x2xf32>
    tpu.vector_store %arg4[%c0_4, %c0_5], %8 {strides = array<i32>} : memref<1x2xf32, #tpu.memory_space<vmem>>, vector<1x2xf32>,
    return
  }
  func.func @transform_0(%arg0: i32) -> (i32, i32) {
    %c0_i32 = arith.constant 0 : i32
    %c0_i32_0 = arith.constant 0 : i32
    return %arg0, %c0_i32 : i32, i32
  }
  func.func @transform_1(%arg0: i32) -> (i32, i32) {
    %c0_i32 = arith.constant 0 : i32
    %c0_i32_0 = arith.constant 0 : i32
    %c0_i32_1 = arith.constant 0 : i32
    return %c0_i32, %c0_i32_0 : i32, i32
  }
  func.func @transform_2(%arg0: i32) -> i32 {
    %c0_i32 = arith.constant 0 : i32
    %c0_i32_0 = arith.constant 0 : i32
    return %c0_i32 : i32
  }
  func.func @transform_3(%arg0: i32) -> (i32, i32) {
    %c0_i32 = arith.constant 0 : i32
    %c0_i32_0 = arith.constant 0 : i32
    return %c0_i32, %arg0 : i32, i32
  }
}

</mosaic_0001>

<llo_original>
// kernel: value_head_forward.1
$region0: #{value_head_forward.1}
  #allocation0 [shape = 'u32[]', space=smem, size = 0x4, offset = 0x4, fixed_abs, tag = 'smem constant byte address 0x4 - core index']
  #allocation1 [shape = 'u32[144,128]{1,0:T(1,128)}', space=vmem, size = 0x12000, scoped, tag = 'internal scratch']
  #allocation2 [shape = 'f32[1]{0:T(128)S(6)}', space=smem, size = 0x200, scoped, tag = 'scoped memory for value_head_forward.1']
  %s0 = inlined_call_operand.vmem [shape: f32[2,32], index: 0, kind: input, shape index: {}]
  %s1 = inlined_call_operand.vmem [shape: f32[1,32], index: 1, kind: input, shape index: {}]
  %s2 = inlined_call_operand.<no memory space> [shape: f32[1], index: 2, kind: input, shape index: {}]
  %s3 = inlined_call_operand.hbm [shape: f32[1,2], index: 3, kind: output, shape index: {}]
  %s4 = sld [smem:[#allocation0]]
  $region22: #{value_head_forward.1} parent=0
    _
  %s6 = ssub.s32 1, %s4
  %s7 = scalar_select 0, %s6, %s4
  %8 = sst [smem:[#allocation2]] %s2
  $region1: #{value_head_forward.1} parent=0
    #allocation3 [shape = 'u8[512]{0}', space=vmem, size = 0x400, scoped, tag = 'output window, operand 0, single buffered']
    #allocation4 [shape = 's32[1]{0}', space=sflag, size = 0x4, scoped, tag = 'scoped memory for value_head_forward.1']
    %9 = vsyncpa [#allocation4], 0
    // Predicated region
    $region2: #{value_head_forward.1} parent=1 // pred_check
      _
    $region3: #{value_head_forward.1} parent=1 // pred_check_branch
      %11 = sbr.rel (0) target = $region5
    $region4: #{value_head_forward.1} parent=1 // pred_region
      _
    $region5: #{value_head_forward.1} parent=1 // pred_fallthru
      _
    // Predicated region
    $region6: #{value_head_forward.1} parent=1 // pred_check
      _
    $region7: #{value_head_forward.1} parent=1 // pred_check_branch
      %13 = sbr.rel (0) target = $region9
    $region8: #{value_head_forward.1} parent=1 // pred_region
      _
    $region9: #{value_head_forward.1} parent=1 // pred_fallthru
      _
    // Predicated region
    $region10: #{value_head_forward.1} parent=1 // pred_check
      _
    $region11: #{value_head_forward.1} parent=1 // pred_check_branch
      %15 = sbr.rel (0) target = $region13
    $region12: #{value_head_forward.1} parent=1 // pred_region
      _
    $region13: #{value_head_forward.1} parent=1 // pred_fallthru
      _
    %v16 = vld [vmem:[%s0] sm:$0x3]
    %v17 = vld [vmem:[%s1] sm:$0x1]
    %v19 = vlaneseq
    %v20 = vshrl.u32 %v19, 7
    %v21 = vsub.s32 0, %v20
    %v22 = vrot.slane %v17, %v21
    %v24 = vmul.f32 %v16, %v22
    %vm25 = vcmask 254976
    %v26 = vsel %vm25, %v24, 0.0
    %27 = vadd.xlane.f32.xlu0 %v26
    %v28 = vpop.xlane.xlu0 %27
    %s29 = sld [smem:[#allocation2]]
    %v30 = vstv %s29
    %v31 = vadd.f32 %v28, %v30
    %v33 = vlaneseq
    %v34 = vand.u32 %v33, 127
    %v35 = vlaneseq
    %v36 = vshrl.u32 %v35, 7
    %v37 = vsub.s32 %v34, %v36
    %v38 = vrot.slane %v31, %v37
    %vm40 = vcmask 8192
    %41 = vst.msk [vmem:[#allocation3] sm:$0x1] %vm40, %v38
    // Predicated region
    $region14: #{value_head_forward.1} parent=1 // pred_check
      _
    $region15: #{value_head_forward.1} parent=1 // pred_check_branch
      %43 = sbr.rel (0) target = $region17
    $region16: #{value_head_forward.1} parent=1 // pred_region
      %s45 = ssub.s32 16, 16
      %46 = vsyncadd [#allocation4], %s45
      %s48 = sshll.u32 [#allocation3], 4
      %s49 = int_to_ptr.vmem [resolvable:$true] %s48
      %51 = dma.vmem_to_hbm [thread:$0]  %s49, 16, %s3, [#allocation4]
    $region17: #{value_head_forward.1} parent=1 // pred_fallthru
      _
    // Predicated region
    $region18: #{value_head_forward.1} parent=1 // pred_check
      _
    $region19: #{value_head_forward.1} parent=1 // pred_check_branch
      %53 = sbr.rel (0) target = $region21
    $region20: #{value_head_forward.1} parent=1 // pred_region
      %54 = dma.done [#allocation4], 16
    $region21: #{value_head_forward.1} parent=1 // pred_fallthru
      _
    %55 = vsyncpa [#allocation4], 1

</llo_original>
